<compile_context>
chip_gen: v7x
topology: tpu7x:2x2x1
jax: 0.10.0
libtpu: 0.0.40
codegen_flags: <defaults>
</compile_context>

<pallas_src>
import jax
import jax.numpy as jnp
from jax.experimental import pallas as pl
from jax.experimental.pallas import tpu as pltpu


def _round_up(x, m):
    return ((x + m - 1) // m) * m


# ----------------------------- Pallas kernel --------------------------------
def _disc_kernel(lat_ref, w_ref, b_ref, o_ref):
    """score[b] = sum_f lat[b, f] * w[f] + bias   for every row b of the tile."""
    lat = lat_ref[...].astype(jnp.float32)            # (tb, F)
    w = w_ref[...].astype(jnp.float32)                 # (1, F) -> broadcasts over rows (VPU)
    s = jnp.sum(lat * w, axis=-1, keepdims=True)       # (tb, 1)  XLU lane reduce
    o_ref[...] = (s + b_ref[0]).astype(o_ref.dtype)    # bias scalar from SMEM


# --------------------------- batch-tile heuristic ----------------------------
_TILE_VMEM_BUDGET = 20 * 1024 * 1024   # bytes for double-buffered in+out tiles
_MAX_BLOCK_ROWS = 4096                 # per-step overhead already well amortised


def _pick_block_b(B, F):
    f_pad = _round_up(F, 128)                       # lane padding in VMEM
    per_row = (f_pad + 128) * 4                     # padded input row + output row
    bb = _TILE_VMEM_BUDGET // (2 * per_row)         # double-buffered
    bb = max(8, min(bb, _MAX_BLOCK_ROWS))
    bb = (bb // 8) * 8
    if B <= bb:
        return B                                    # single full-extent block
    # large batch: keep >= 2 grid steps so both v7x TensorCores get work
    half = _round_up((B + 1) // 2, 8)
    return max(8, min(bb, half))


# --------------------------------- wrapper -----------------------------------
def unconditional_discriminator_forward(lat, weight, bias, *, block_b=None,
                                        force_pallas=False):
    """lat: (B, lat_size). weight: (1, lat_size) torch layout. bias: (1,).

    Returns score of shape (B, 1), matching nn.Linear(lat_size, 1)(lat).
    """
    B, F = lat.shape
    assert weight.shape == (1, F) and bias.shape == (1,)

    # Tiny problems: the pallas_call launch overhead dominates; a fused XLA
    # matvec (or fusing into the producer of `lat`) is strictly cheaper.
    if not force_pallas and B * F * lat.dtype.itemsize < (1 << 20):
        return (jnp.dot(lat, weight.T.astype(lat.dtype),
                        precision=jax.lax.Precision.HIGHEST)
                + bias.astype(lat.dtype)).astype(lat.dtype)

    if block_b is None:
        block_b = _pick_block_b(B, F)
    grid = (pl.cdiv(B, block_b),)

    w_row = weight.astype(lat.dtype)                  # natural (1, F) row layout
    b_smem = bias.astype(jnp.float32).reshape(1)      # scalar -> SMEM

    itemsize = lat.dtype.itemsize
    bytes_accessed = (B * F * itemsize                # activation read
                      + F * itemsize                  # weight row
                      + 4                             # bias scalar
                      + B * itemsize)                 # score write

    out = pl.pallas_call(
        _disc_kernel,
        out_shape=jax.ShapeDtypeStruct((B, 1), lat.dtype),
        grid=grid,
        in_specs=[
            pl.BlockSpec((block_b, F), lambda i: (i, 0)),          # tiled activations
            pl.BlockSpec((1, F), lambda i: (0, 0)),                # weight stays resident
            pl.BlockSpec(memory_space=pltpu.MemorySpace.SMEM),     # bias scalar
        ],
        out_specs=pl.BlockSpec((block_b, 1), lambda i: (i, 0)),
        compiler_params=pltpu.CompilerParams(
            dimension_semantics=("parallel",),        # shard batch across v7x cores
            vmem_limit_bytes=32 * 1024 * 1024),       # explicit (v5e default is 16 MiB)
        cost_estimate=pl.CostEstimate(
            flops=2 * B * F,
            transcendentals=0,
            bytes_accessed=bytes_accessed),
    )(lat, w_row, b_smem)
    return out


# --------------------------- parameter creation ------------------------------
def make_discriminator_params(key, lat_size):
    """PyTorch nn.Linear default init: U(-1/sqrt(fin), 1/sqrt(fin))."""
    kw, kb = jax.random.split(key)
    bound = 1.0 / jnp.sqrt(jnp.float32(lat_size))
    weight = jax.random.uniform(kw, (1, lat_size), jnp.float32, -bound, bound)
    bias = jax.random.uniform(kb, (1,), jnp.float32, -bound, bound)
    return dict(weight=weight, bias=bias)


# ------------------------------ reference ------------------------------------
def _reference(lat, params):
    return (jnp.dot(lat, params["weight"].T,
                    precision=jax.lax.Precision.HIGHEST) + params["bias"])


if __name__ == "__main__":
    # TODO(synk): the auto_reg register_hook gradient tweak is a backward-pass
    # side effect only; it has no forward-pass Pallas equivalent.
    lat_size = 32
    wavify_lat = False                         # module doubles lat_size when True
    eff_lat_size = lat_size * (2 if wavify_lat else 1)
    batch = 8

    key = jax.random.PRNGKey(0)
    kx, kp, kx2, kp2 = jax.random.split(key, 4)

    # Small default configuration from the module.
    lat = jax.random.normal(kx, (batch, eff_lat_size), jnp.float32)
    params = make_discriminator_params(kp, eff_lat_size)
    score = unconditional_discriminator_forward(
        lat, params["weight"], params["bias"], force_pallas=True)
    score = jax.block_until_ready(score)
    ref = _reference(lat, params)
    assert score.shape == (batch, 1)
    assert jnp.allclose(score, ref, atol=1e-5, rtol=1e-5), "mismatch vs reference"

    # Second config exercising the multi-block grid and a partial last tile.
    B2, F2 = 300, 96
    lat2 = jax.random.normal(kx2, (B2, F2), jnp.float32)
    params2 = make_discriminator_params(kp2, F2)
    score2 = unconditional_discriminator_forward(
        lat2, params2["weight"], params2["bias"], block_b=128, force_pallas=True)
    score2 = jax.block_until_ready(score2)
    ref2 = _reference(lat2, params2)
    assert score2.shape == (B2, 1)
    assert jnp.allclose(score2, ref2, atol=1e-5, rtol=1e-5), "mismatch vs reference (cfg2)"

    print("KERNEL_OK")
</pallas_src>

<mosaic_0001>
module attributes {stable_mosaic.version = 11 : i64} {
  func.func @_disc_kernel(%arg0: i32, %arg1: memref<8x32xf32, #tpu.memory_space<vmem>>, %arg2: memref<1x32xf32, #tpu.memory_space<vmem>>, %arg3: memref<1xf32, #tpu.memory_space<smem>>, %arg4: memref<8x1xf32, #tpu.memory_space<vmem>>) attributes {dimension_semantics = [#tpu.dimension_semantics<parallel>], iteration_bounds = array<i64: 1>, scalar_prefetch = 0 : i64, scratch_operands = 0 : i64, tpu.core_type = #tpu.core_type<tc>, window_params = [{transform_indices = @transform_0, window_bounds = array<i64: 8, 32>}, {pipeline_mode = #tpu.pipeline_mode<synchronous>, transform_indices = @transform_1, window_bounds = array<i64: 1, 32>}, {transform_indices = @transform_2, window_bounds = array<i64: 1>}, {transform_indices = @transform_3, window_bounds = array<i64: 8, 1>}]} {
    %c0 = arith.constant 0 : index
    %c0_0 = arith.constant 0 : index
    %0 = vector.load %arg1[%c0, %c0_0] : memref<8x32xf32, #tpu.memory_space<vmem>>, vector<8x32xf32>
    %c0_1 = arith.constant 0 : index
    %c0_2 = arith.constant 0 : index
    %1 = vector.load %arg2[%c0_1, %c0_2] : memref<1x32xf32, #tpu.memory_space<vmem>>, vector<1x32xf32>
    %2 = vector.broadcast %1 : vector<1x32xf32> to vector<8x32xf32>
    %3 = arith.mulf %0, %2 : vector<8x32xf32>
    %cst = arith.constant dense<0.000000e+00> : vector<8xf32>
    %4 = vector.multi_reduction <add>, %3, %cst [1] : vector<8x32xf32> to vector<8xf32>
    %5 = vector.shape_cast %4 : vector<8xf32> to vector<8x1xf32>
    %c0_3 = arith.constant 0 : index
    %6 = memref.load %arg3[%c0_3] : memref<1xf32, #tpu.memory_space<smem>>
    %7 = vector.broadcast %6 : f32 to vector<8x1xf32>
    %8 = arith.addf %5, %7 : vector<8x1xf32>
    %c0_4 = arith.constant 0 : index
    %c0_5 = arith.constant 0 : index
    %9 = vector.load %arg4[%c0_4, %c0_5] : memref<8x1xf32, #tpu.memory_space<vmem>>, vector<8x1xf32>
    tpu.vector_store %arg4[%c0_4, %c0_5], %8 {strides = array<i32>} : memref<8x1xf32, #tpu.memory_space<vmem>>, vector<8x1xf32>,
    return
  }
  func.func @transform_0(%arg0: i32) -> (i32, i32) {
    %c0_i32 = arith.constant 0 : i32
    %c0_i32_0 = arith.constant 0 : i32
    return %arg0, %c0_i32 : i32, i32
  }
  func.func @transform_1(%arg0: i32) -> (i32, i32) {
    %c0_i32 = arith.constant 0 : i32
    %c0_i32_0 = arith.constant 0 : i32
    %c0_i32_1 = arith.constant 0 : i32
    return %c0_i32, %c0_i32_0 : i32, i32
  }
  func.func @transform_2(%arg0: i32) -> i32 {
    %c0_i32 = arith.constant 0 : i32
    %c0_i32_0 = arith.constant 0 : i32
    return %c0_i32 : i32
  }
  func.func @transform_3(%arg0: i32) -> (i32, i32) {
    %c0_i32 = arith.constant 0 : i32
    %c0_i32_0 = arith.constant 0 : i32
    return %arg0, %c0_i32 : i32, i32
  }
}

</mosaic_0001>

<llo_original>
// kernel: tpu_custom_call.1
$region0: #{tpu_custom_call.1}
  #allocation0 [shape = 'u32[]', space=smem, size = 0x4, offset = 0x4, fixed_abs, tag = 'smem constant byte address 0x4 - core index']
  #allocation1 [shape = 'u32[144,128]{1,0:T(1,128)}', space=vmem, size = 0x12000, scoped, tag = 'internal scratch']
  #allocation2 [shape = 'f32[1]{0:T(128)S(6)}', space=smem, size = 0x200, scoped, tag = 'scoped memory for tpu_custom_call.1']
  %s0 = inlined_call_operand.hbm [shape: f32[8,32], index: 0, kind: input, shape index: {}]
  %s1 = inlined_call_operand.vmem [shape: f32[1,32], index: 1, kind: input, shape index: {}]
  %s2 = inlined_call_operand.<no memory space> [shape: f32[1], index: 2, kind: input, shape index: {}]
  %s3 = inlined_call_operand.vmem [shape: f32[8,1], index: 3, kind: output, shape index: {}]
  %s4 = sld [smem:[#allocation0]]
  $region26: #{tpu_custom_call.1} parent=0
    _
  %s6 = ssub.s32 1, %s4
  %s7 = scalar_select 0, %s6, %s4
  %8 = sst [smem:[#allocation2]] %s2
  $region1: #{tpu_custom_call.1} parent=0
    #allocation3 [shape = 'u8[4096]{0}', space=vmem, size = 0x1000, scoped, tag = 'input window, operand 0, single buffered']
    #allocation4 [shape = 's32[1]{0}', space=sflag, size = 0x4, scoped, tag = 'scoped memory for tpu_custom_call.1']
    %9 = vsyncpa [#allocation4], 0
    // Predicated region
    $region2: #{tpu_custom_call.1} parent=1 // pred_check
      _
    $region3: #{tpu_custom_call.1} parent=1 // pred_check_branch
      %11 = sbr.rel (0) target = $region5
    $region4: #{tpu_custom_call.1} parent=1 // pred_region
      %s13 = ssub.s32 128, 128
      %14 = vsyncadd [#allocation4], %s13
      %s16 = sshll.u32 [#allocation3], 4
      %s17 = int_to_ptr.vmem [resolvable:$true] %s16
      %19 = dma.hbm_to_vmem [thread:$0]  %s0, 128, %s17, [#allocation4]
    $region5: #{tpu_custom_call.1} parent=1 // pred_fallthru
      _
    // Predicated region
    $region6: #{tpu_custom_call.1} parent=1 // pred_check
      _
    $region7: #{tpu_custom_call.1} parent=1 // pred_check_branch
      %21 = sbr.rel (0) target = $region9
    $region8: #{tpu_custom_call.1} parent=1 // pred_region
      _
    $region9: #{tpu_custom_call.1} parent=1 // pred_fallthru
      _
    // Predicated region
    $region10: #{tpu_custom_call.1} parent=1 // pred_check
      _
    $region11: #{tpu_custom_call.1} parent=1 // pred_check_branch
      %23 = sbr.rel (0) target = $region13
    $region12: #{tpu_custom_call.1} parent=1 // pred_region
      _
    $region13: #{tpu_custom_call.1} parent=1 // pred_fallthru
      _
    // Predicated region
    $region14: #{tpu_custom_call.1} parent=1 // pred_check
      _
    $region15: #{tpu_custom_call.1} parent=1 // pred_check_branch
      %25 = sbr.rel (0) target = $region17
    $region16: #{tpu_custom_call.1} parent=1 // pred_region
      %26 = dma.done [#allocation4], 128
    $region17: #{tpu_custom_call.1} parent=1 // pred_fallthru
      _
    %v27 = vld [vmem:[#allocation3] sm:$0xff]
    %v28 = vld [vmem:[%s1] sm:$0x1]
    %v30 = vlaneseq
    %v31 = vshrl.u32 %v30, 7
    %v32 = vsub.s32 0, %v31
    %v33 = vrot.slane %v28, %v32
    %v35 = vmul.f32 %v27, %v33
    %vm36 = vcmask 261120
    %v37 = vsel %vm36, %v35, 0.0
    %38 = vadd.xlane.f32.xlu0 %v37
    %v39 = vpop.xlane.xlu0 %38
    %s40 = sld [smem:[#allocation2]]
    %v41 = vstv %s40
    %v42 = vadd.f32 %v39, %v41
    %vm43 = vcmask 7168
    %44 = vst.msk [vmem:[%s3] sm:$0xff] %vm43, %v42
    // Predicated region
    $region18: #{tpu_custom_call.1} parent=1 // pred_check
      _
    $region19: #{tpu_custom_call.1} parent=1 // pred_check_branch
      %46 = sbr.rel (0) target = $region21
    $region20: #{tpu_custom_call.1} parent=1 // pred_region
      _
    $region21: #{tpu_custom_call.1} parent=1 // pred_fallthru
      _
    // Predicated region
    $region22: #{tpu_custom_call.1} parent=1 // pred_check
      _
    $region23: #{tpu_custom_call.1} parent=1 // pred_check_branch
      %48 = sbr.rel (0) target = $region25
    $region24: #{tpu_custom_call.1} parent=1 // pred_region
      _
    $region25: #{tpu_custom_call.1} parent=1 // pred_fallthru
      _
    %49 = vsyncpa [#allocation4], 1

</llo_original>
